<compile_context>
chip_gen: v5e
topology: v5e:2x2
jax: 0.10.0
libtpu: 0.0.40
codegen_flags: <defaults>
</compile_context>

<pallas_src>
import functools

import jax
import jax.numpy as jnp
from jax.experimental import pallas as pl
from jax.experimental.pallas import tpu as pltpu


def _round_up(x, m):
    return ((x + m - 1) // m) * m


def _largest_aligned_divisor(total, requested, align):
    """Largest multiple of `align` that divides `total` and is <= requested.

    Assumes `total` is itself a multiple of `align` (weights are padded to
    128-aligned dims at init), so the loop always terminates at `align`.
    """
    t = min(requested, total)
    t = max((t // align) * align, align)
    while total % t != 0:
        t -= align
    return t


def _rtn_quantize(w):
    """RTN per-output-channel int8 quantization (one-time setup, plain JAX).

    w: [N, K] float32  ->  (wq [K, N] int8, scale [1, N] float32)
    """
    absmax = jnp.max(jnp.abs(w), axis=1, keepdims=True)              # [N, 1]
    scale = jnp.maximum(absmax, 1e-8) / 127.0                        # [N, 1]
    wq = jnp.clip(jnp.round(w / scale), -127, 127).astype(jnp.int8)  # [N, K]
    return wq.T, scale.T                                             # [K, N], [1, N]


def quant_linear_kernel(x_ref, wq_ref, scale_ref, bias_ref, o_ref, acc_ref):
    k = pl.program_id(2)

    @pl.when(k == 0)
    def _init():
        acc_ref[...] = jnp.zeros_like(acc_ref)

    # x is already bf16 (cast once in the wrapper).  int8 weight tile feeds the
    # MXU as bf16 (exact for |q| <= 127); per-channel scale is factored out to
    # the epilogue, so the dequant multiply costs tm*tn, not tk*tn, elements.
    acc_ref[...] += jnp.dot(
        x_ref[...],
        wq_ref[...].astype(jnp.bfloat16),
        preferred_element_type=jnp.float32,
    )

    @pl.when(k == pl.num_programs(2) - 1)
    def _finalize():
        # (1, tn) scale/bias broadcast once per output tile, only in the epilogue.
        o_ref[...] = (acc_ref[...] * scale_ref[...] + bias_ref[...]).astype(o_ref.dtype)


@functools.partial(jax.jit, static_argnames=("tm", "tn", "tk", "out_dtype"))
def quant_linear(x2d, wq, scale, bias, *, tm=512, tn=512, tk=1024,
                 out_dtype=jnp.bfloat16):
    """Quantized linear: y = x @ (wq * scale) + bias.

    x2d:   [M, K]  float (cast to bf16 here)
    wq:    [Kp, Np] int8   (pre-padded, 128-aligned, at model init)
    scale: [1, Np] float32 (pre-padded)
    bias:  [1, Np] float32 (pre-padded)
    returns [M, Np] out_dtype (caller slices to logical N).
    """
    M, K = x2d.shape
    Kp, Np = wq.shape

    # bf16 activations: halves x DMA + VMEM; exact for the bf16 MXU path anyway.
    x2d = x2d.astype(jnp.bfloat16)

    # Clamp/choose tiles.  tk/tn must divide the (128-aligned) weight dims so
    # the big int8 weight is never padded per call; M-padding of x is cheap.
    tm = min(tm, _round_up(M, 8))
    tk = _largest_aligned_divisor(Kp, tk, 128)
    tn = _largest_aligned_divisor(Np, tn, 128)
    Mp = _round_up(M, tm)

    # Megacore (v7x has 2 TCs): if M fits a single block, split N into >= 2
    # blocks so both cores get work on a "parallel" grid axis.
    if Mp // tm == 1 and Np // tn < 2 and Np // 128 >= 2:
        tn = _largest_aligned_divisor(Np, Np // 2, 128)

    if (Mp, Kp) != (M, K):
        x2d = jnp.pad(x2d, ((0, Mp - M), (0, Kp - K)))

    grid = (Mp // tm, Np // tn, Kp // tk)
    out_itemsize = jnp.dtype(out_dtype).itemsize

    # Double-buffered working set (bf16 x, int8 wq, out, scale/bias) + f32 acc.
    vmem_bytes = (2 * (tm * tk * 2 + tk * tn * 1 + tm * tn * out_itemsize
                       + 2 * 1 * tn * 4)
                  + tm * tn * 4)
    # Raise scoped VMEM (v5e default is 16 MiB) but stay well under v7x's 64 MiB.
    vmem_limit = int(min(max(vmem_bytes * 3 // 2, 32 << 20), 48 << 20))

    cost = pl.CostEstimate(
        flops=2 * Mp * Np * Kp,
        transcendentals=0,
        bytes_accessed=int(Mp * Kp * 2 + Kp * Np * 1 + Mp * Np * out_itemsize),
    )

    out = pl.pallas_call(
        quant_linear_kernel,
        out_shape=jax.ShapeDtypeStruct((Mp, Np), out_dtype),
        grid_spec=pltpu.PrefetchScalarGridSpec(
            num_scalar_prefetch=0,
            grid=grid,
            in_specs=[
                pl.BlockSpec((tm, tk), lambda i, j, k: (i, k)),   # bf16 activations
                pl.BlockSpec((tk, tn), lambda i, j, k: (k, j)),   # int8 weights
                pl.BlockSpec((1, tn), lambda i, j, k: (0, j)),    # per-channel scale
                pl.BlockSpec((1, tn), lambda i, j, k: (0, j)),    # bias
            ],
            out_specs=pl.BlockSpec((tm, tn), lambda i, j, k: (i, j)),
            scratch_shapes=[pltpu.VMEM((tm, tn), jnp.float32)],
        ),
        compiler_params=pltpu.CompilerParams(
            dimension_semantics=("parallel", "parallel", "arbitrary"),
            vmem_limit_bytes=vmem_limit,
        ),
        cost_estimate=cost,
    )(x2d, wq, scale, bias)

    if Mp != M:
        out = out[:M]
    return out


class QuantModelJAX:
    """JAX analogue of QuantModel: holds RTN-quantized params, forward = model(x).

    The wrapped "model" is a single quantized linear (hidden -> out), which is
    exactly what substitute_module produces for each nn.Linear in the HF model.
    """

    def __init__(self, key, hidden, out, align=128):
        kw, kb = jax.random.split(key)
        w = jax.random.normal(kw, (out, hidden), dtype=jnp.float32) * 0.05
        bias = jax.random.normal(kb, (1, out), dtype=jnp.float32) * 0.01

        wq, scale = _rtn_quantize(w)                      # quant() at init time

        # One-time padding to 128-aligned K/N so the hot path never pads the
        # (potentially large) weight per forward call.
        K, N = wq.shape
        Kp, Np = _round_up(K, align), _round_up(N, align)
        self.in_features = K
        self.out_features = N
        self.wq = jnp.pad(wq, ((0, Kp - K), (0, Np - N)))
        self.scale = jnp.pad(scale, ((0, 0), (0, Np - N)))
        self.bias = jnp.pad(bias, ((0, 0), (0, Np - N)))

    def __call__(self, x):
        # x: [batch, seq, hidden] -> [batch, seq, out]
        B, S, H = x.shape
        y2d = quant_linear(x.reshape(B * S, H), self.wq, self.scale, self.bias)
        y2d = y2d[:, : self.out_features]
        return y2d.reshape(B, S, -1)


if __name__ == "__main__":
    key = jax.random.PRNGKey(0)
    k_x, k_p = jax.random.split(key)

    batch, seq, hidden, out = 2, 8, 128, 128
    x = jax.random.normal(k_x, (batch, seq, hidden), dtype=jnp.float32)

    model = QuantModelJAX(k_p, hidden, out)
    y = model(x)
    y = jax.block_until_ready(y)

    # Reference: dequantized f32 linear.  bf16 MXU operands + bf16 output are
    # an intentional inference precision trade-off, so tolerance is loosened
    # vs. a pure-f32 matmul.
    w_deq = model.wq.astype(jnp.float32) * model.scale            # [Kp, Np]
    y_ref = x.reshape(-1, hidden) @ w_deq[:hidden, :out] + model.bias[:, :out]
    y_f32 = y.reshape(-1, out).astype(jnp.float32)
    assert jnp.allclose(y_f32, y_ref, atol=3e-2, rtol=3e-2), (
        float(jnp.max(jnp.abs(y_f32 - y_ref))))

    print("KERNEL_OK")
</pallas_src>

<mosaic_0001>
module attributes {stable_mosaic.version = 11 : i64} {
  func.func @quant_linear_kernel(%arg0: i32, %arg1: i32, %arg2: i32, %arg3: memref<16x128xbf16, #tpu.memory_space<vmem>>, %arg4: memref<128x128xi8, #tpu.memory_space<vmem>>, %arg5: memref<1x128xf32, #tpu.memory_space<vmem>>, %arg6: memref<1x128xf32, #tpu.memory_space<vmem>>, %arg7: memref<16x128xbf16, #tpu.memory_space<vmem>>, %arg8: memref<16x128xf32, #tpu.memory_space<vmem>>) attributes {dimension_semantics = [#tpu.dimension_semantics<parallel>, #tpu.dimension_semantics<parallel>, #tpu.dimension_semantics<arbitrary>], iteration_bounds = array<i64: 1, 1, 1>, scalar_prefetch = 0 : i64, scratch_operands = 1 : i64, tpu.core_type = #tpu.core_type<tc>, window_params = [{transform_indices = @transform_0, window_bounds = array<i64: 16, 128>}, {transform_indices = @transform_1, window_bounds = array<i64: 128, 128>}, {transform_indices = @transform_2, window_bounds = array<i64: 1, 128>}, {transform_indices = @transform_3, window_bounds = array<i64: 1, 128>}, {transform_indices = @transform_4, window_bounds = array<i64: 16, 128>}]} {
    %c0_i32 = arith.constant 0 : i32
    %0 = arith.cmpi eq, %arg2, %c0_i32 : i32
    %1 = arith.extui %0 : i1 to i32
    %c0_i32_0 = arith.constant 0 : i32
    %2 = arith.cmpi ne, %1, %c0_i32_0 : i32
    scf.if %2 {
      %cst_10 = arith.constant 0.000000e+00 : f32
      %13 = vector.broadcast %cst_10 : f32 to vector<16x128xf32>
      %c0_11 = arith.constant 0 : index
      %c0_12 = arith.constant 0 : index
      %14 = vector.load %arg8[%c0_11, %c0_12] : memref<16x128xf32, #tpu.memory_space<vmem>>, vector<16x128xf32>
      tpu.vector_store %arg8[%c0_11, %c0_12], %13 {strides = array<i32>} : memref<16x128xf32, #tpu.memory_space<vmem>>, vector<16x128xf32>,
    } else {
    }
    %c0 = arith.constant 0 : index
    %c0_1 = arith.constant 0 : index
    %3 = vector.load %arg8[%c0, %c0_1] : memref<16x128xf32, #tpu.memory_space<vmem>>, vector<16x128xf32>
    %c0_2 = arith.constant 0 : index
    %c0_3 = arith.constant 0 : index
    %4 = vector.load %arg3[%c0_2, %c0_3] : memref<16x128xbf16, #tpu.memory_space<vmem>>, vector<16x128xbf16>
    %c0_4 = arith.constant 0 : index
    %c0_5 = arith.constant 0 : index
    %5 = vector.load %arg4[%c0_4, %c0_5] : memref<128x128xi8, #tpu.memory_space<vmem>>, vector<128x128xi8>
    %6 = arith.sitofp %5 : vector<128x128xi8> to vector<128x128xbf16>
    %cst = arith.constant dense<0.000000e+00> : vector<16x128xf32>
    %7 = tpu.matmul %4, %6, %cst {dimension_numbers = #tpu.dot_dimension_numbers<[1], [0], [0], [1], [0, 0, 1, 1], [], []>} : vector<16x128xbf16>, vector<128x128xbf16>, vector<16x128xf32> -> vector<16x128xf32>
    %8 = arith.addf %3, %7 : vector<16x128xf32>
    %c0_6 = arith.constant 0 : index
    %c0_7 = arith.constant 0 : index
    %9 = vector.load %arg8[%c0_6, %c0_7] : memref<16x128xf32, #tpu.memory_space<vmem>>, vector<16x128xf32>
    tpu.vector_store %arg8[%c0_6, %c0_7], %8 {strides = array<i32>} : memref<16x128xf32, #tpu.memory_space<vmem>>, vector<16x128xf32>,
    %c0_i32_8 = arith.constant 0 : i32
    %10 = arith.cmpi eq, %arg2, %c0_i32_8 : i32
    %11 = arith.extui %10 : i1 to i32
    %c0_i32_9 = arith.constant 0 : i32
    %12 = arith.cmpi ne, %11, %c0_i32_9 : i32
    scf.if %12 {
      %c0_10 = arith.constant 0 : index
      %c0_11 = arith.constant 0 : index
      %13 = vector.load %arg8[%c0_10, %c0_11] : memref<16x128xf32, #tpu.memory_space<vmem>>, vector<16x128xf32>
      %c0_12 = arith.constant 0 : index
      %c0_13 = arith.constant 0 : index
      %14 = vector.load %arg5[%c0_12, %c0_13] : memref<1x128xf32, #tpu.memory_space<vmem>>, vector<1x128xf32>
      %15 = vector.broadcast %14 : vector<1x128xf32> to vector<16x128xf32>
      %16 = arith.mulf %13, %15 : vector<16x128xf32>
      %c0_14 = arith.constant 0 : index
      %c0_15 = arith.constant 0 : index
      %17 = vector.load %arg6[%c0_14, %c0_15] : memref<1x128xf32, #tpu.memory_space<vmem>>, vector<1x128xf32>
      %18 = vector.broadcast %17 : vector<1x128xf32> to vector<16x128xf32>
      %19 = arith.addf %16, %18 : vector<16x128xf32>
      %20 = arith.truncf %19 : vector<16x128xf32> to vector<16x128xbf16>
      %c0_16 = arith.constant 0 : index
      %c0_17 = arith.constant 0 : index
      %21 = vector.load %arg7[%c0_16, %c0_17] : memref<16x128xbf16, #tpu.memory_space<vmem>>, vector<16x128xbf16>
      tpu.vector_store %arg7[%c0_16, %c0_17], %20 {strides = array<i32>} : memref<16x128xbf16, #tpu.memory_space<vmem>>, vector<16x128xbf16>,
    } else {
    }
    return
  }
  func.func @transform_0(%arg0: i32, %arg1: i32, %arg2: i32) -> (i32, i32) {
    %c0_i32 = arith.constant 0 : i32
    return %arg0, %arg2 : i32, i32
  }
  func.func @transform_1(%arg0: i32, %arg1: i32, %arg2: i32) -> (i32, i32) {
    %c0_i32 = arith.constant 0 : i32
    return %arg2, %arg1 : i32, i32
  }
  func.func @transform_2(%arg0: i32, %arg1: i32, %arg2: i32) -> (i32, i32) {
    %c0_i32 = arith.constant 0 : i32
    %c0_i32_0 = arith.constant 0 : i32
    return %c0_i32, %arg1 : i32, i32
  }
  func.func @transform_3(%arg0: i32, %arg1: i32, %arg2: i32) -> (i32, i32) {
    %c0_i32 = arith.constant 0 : i32
    %c0_i32_0 = arith.constant 0 : i32
    return %c0_i32, %arg1 : i32, i32
  }
  func.func @transform_4(%arg0: i32, %arg1: i32, %arg2: i32) -> (i32, i32) {
    %c0_i32 = arith.constant 0 : i32
    return %arg0, %arg1 : i32, i32
  }
}

</mosaic_0001>

<llo_original>
// kernel: quant_linear.1
$region0: #{quant_linear.1}
  #allocation0 [shape = 'u32[]', space=smem, size = 0x4, offset = 0x4, fixed_abs, tag = 'smem constant byte address 0x4 - core index']
  #allocation1 [shape = 'u32[72,128]{1,0:T(1,128)}', space=vmem, size = 0x9000, scoped, tag = 'internal scratch']
  #allocation2 [shape = 'f32[16,128]{1,0:T(8,128)}', space=vmem, size = 0x2000, scoped, tag = 'scratch operand']
  %s0 = inlined_call_operand.vmem [shape: bf16[16,128], index: 0, kind: input, shape index: {}]
  %s1 = inlined_call_operand.hbm [shape: s8[128,128], index: 1, kind: input, shape index: {}]
  %s2 = inlined_call_operand.vmem [shape: f32[1,128], index: 2, kind: input, shape index: {}]
  %s3 = inlined_call_operand.vmem [shape: f32[1,128], index: 3, kind: input, shape index: {}]
  %s4 = inlined_call_operand.hbm [shape: bf16[16,128], index: 4, kind: output, shape index: {}]
  %s5 = sld [smem:[#allocation0]]
  $region38: #{quant_linear.1} parent=0
    _
  %s7 = ssub.s32 1, %s5
  %s8 = scalar_select 0, %s7, %s5
  $region1: #{quant_linear.1} parent=0
    #allocation3 [shape = 'u8[16384]{0}', space=vmem, size = 0x4000, scoped, tag = 'input window, operand 1, single buffered']
    #allocation4 [shape = 's32[1]{0}', space=sflag, size = 0x4, scoped, tag = 'scoped memory for quant_linear.1']
    #allocation5 [shape = 's32[1]{0}', space=sflag, size = 0x4, scoped, tag = 'scoped memory for quant_linear.1']
    #allocation6 [shape = 'u8[4096]{0}', space=vmem, size = 0x1000, scoped, tag = 'output window, operand 0, single buffered']
    %9 = vsyncpa [#allocation4], 0
    %10 = vsyncpa [#allocation5], 0
    // Predicated region
    $region2: #{quant_linear.1} parent=1 // pred_check
      _
    $region3: #{quant_linear.1} parent=1 // pred_check_branch
      %12 = sbr.rel (0) target = $region5
    $region4: #{quant_linear.1} parent=1 // pred_region
      _
    $region5: #{quant_linear.1} parent=1 // pred_fallthru
      _
    // Predicated region
    $region6: #{quant_linear.1} parent=1 // pred_check
      _
    $region7: #{quant_linear.1} parent=1 // pred_check_branch
      %14 = sbr.rel (0) target = $region9
    $region8: #{quant_linear.1} parent=1 // pred_region
      %16 = vsyncadd [#allocation4], 0
      %s17 = sshll.u32 %s1, 4
      %s18 = int_to_ptr.hbm [resolvable:$true] %s17
      %s19 = sshll.u32 [#allocation3], 4
      %s20 = int_to_ptr.vmem [resolvable:$true] %s19
      %25 = dma.hbm_to_vmem [thread:$0]  %s18, 512, %s20, [#allocation4], 128, 128, 8
    $region9: #{quant_linear.1} parent=1 // pred_fallthru
      _
    // Predicated region
    $region10: #{quant_linear.1} parent=1 // pred_check
      _
    $region11: #{quant_linear.1} parent=1 // pred_check_branch
      %27 = sbr.rel (0) target = $region13
    $region12: #{quant_linear.1} parent=1 // pred_region
      _
    $region13: #{quant_linear.1} parent=1 // pred_fallthru
      _
    // Predicated region
    $region14: #{quant_linear.1} parent=1 // pred_check
      _
    $region15: #{quant_linear.1} parent=1 // pred_check_branch
      %29 = sbr.rel (0) target = $region17
    $region16: #{quant_linear.1} parent=1 // pred_region
      _
    $region17: #{quant_linear.1} parent=1 // pred_fallthru
      _
    // Predicated region
    $region18: #{quant_linear.1} parent=1 // pred_check
      _
    $region19: #{quant_linear.1} parent=1 // pred_check_branch
      %31 = sbr.rel (0) target = $region21
    $region20: #{quant_linear.1} parent=1 // pred_region
      %33 = dma.done [#allocation4], 512
    $region21: #{quant_linear.1} parent=1 // pred_fallthru
      _
    %p34 = scmp.eq.s32.totalorder 0, 0
    // Predicated region
    $region22: #{quant_linear.1} parent=1 // pred_check
      %p35 = pneg %p34
    $region23: #{quant_linear.1} parent=1 // pred_check_branch
      %37 = sbr.rel (%p35) target = $region25
    $region24: #{quant_linear.1} parent=1 // pred_region
      %38 = vst [vmem:[#allocation2] sm:$0xff] 0.0
      %39 = vst [vmem:[#allocation2 + $0x8] sm:$0xff] 0.0
    $region25: #{quant_linear.1} parent=1 // pred_fallthru
      _
    %v40 = vld [vmem:[#allocation2] sm:$0xff]
    %v41 = vld [vmem:[#allocation2 + $0x8] sm:$0xff]
    %v42 = vld [vmem:[%s0] sm:$0xf]
    %v43 = vld [vmem:[%s0 + $0x4] sm:$0xf]
    %v44 = vld [vmem:[#allocation3] sm:$0xff]
    %v45 = vld [vmem:[#allocation3 + $0x8] sm:$0xff]
    %v46 = vld [vmem:[#allocation3 + $0x10] sm:$0xff]
    %v47 = vld [vmem:[#allocation3 + $0x18] sm:$0xff]
    %v48 = vunpack.c.0.s8 %v44
    %v49 = vunpack.c.1.s8 %v44
    %v50 = vunpack.c.2.s8 %v44
    %v51 = vunpack.c.3.s8 %v44
    %v52 = vunpack.c.0.s8 %v45
    %v53 = vunpack.c.1.s8 %v45
    %v54 = vunpack.c.2.s8 %v45
    %v55 = vunpack.c.3.s8 %v45
    %v56 = vunpack.c.0.s8 %v46
    %v57 = vunpack.c.1.s8 %v46
    %v58 = vunpack.c.2.s8 %v46
    %v59 = vunpack.c.3.s8 %v46
    %v60 = vunpack.c.0.s8 %v47
    %v61 = vunpack.c.1.s8 %v47
    %v62 = vunpack.c.2.s8 %v47
    %v63 = vunpack.c.3.s8 %v47
    %v64 = vcvt.s32.f32 %v48
    %v65 = vcvt.s32.f32 %v49
    %v66 = vcvt.s32.f32 %v50
    %v67 = vcvt.s32.f32 %v51
    %v68 = vcvt.s32.f32 %v52
    %v69 = vcvt.s32.f32 %v53
    %v70 = vcvt.s32.f32 %v54
    %v71 = vcvt.s32.f32 %v55
    %v72 = vcvt.s32.f32 %v56
    %v73 = vcvt.s32.f32 %v57
    %v74 = vcvt.s32.f32 %v58
    %v75 = vcvt.s32.f32 %v59
    %v76 = vcvt.s32.f32 %v60
    %v77 = vcvt.s32.f32 %v61
    %v78 = vcvt.s32.f32 %v62
    %v79 = vcvt.s32.f32 %v63
    %v80 = vpack.c.bf16 %v65, %v64
    %v81 = vpack.c.bf16 %v67, %v66
    %v82 = vpack.c.bf16 %v69, %v68
    %v83 = vpack.c.bf16 %v71, %v70
    %v84 = vpack.c.bf16 %v73, %v72
    %v85 = vpack.c.bf16 %v75, %v74
    %v86 = vpack.c.bf16 %v77, %v76
    %v87 = vpack.c.bf16 %v79, %v78
    %v90 = vunpack.c.l.b16 %v42
    %v91 = vunpack.c.l.b16 %v43
    %v92 = vpack.c.b16 %v91, %v90
    %94 = vmatpush.bf16.msra.mxu0 %v87
    %95 = vmatpush.bf16.msra.mxu0 %v86
    %96 = vmatpush.bf16.msra.mxu0 %v85
    %97 = vmatpush.bf16.msra.mxu0 %v84
    %98 = vmatpush.bf16.msra.mxu0 %v83
    %99 = vmatpush.bf16.msra.mxu0 %v82
    %100 = vmatpush.bf16.msra.mxu0 %v81
    %101 = vmatpush.bf16.msra.mxu0 %v80
    %102 = vmatmul.bf16.gmra.mxu0 %v92
    %v103 = vpop.f32.mrf.mxu0
    %v104 = vadd.f32 0.0, %v103
    %v105 = vpop.f32.mrf.mxu0
    %v106 = vadd.f32 0.0, %v105
    %107 = vdwg.mxu0
    %v108 = vadd.f32 %v40, %v104
    %v109 = vadd.f32 %v41, %v106
    %110 = vst [vmem:[#allocation2] sm:$0xff] %v108
    %111 = vst [vmem:[#allocation2 + $0x8] sm:$0xff] %v109
    // Predicated region
    $region26: #{quant_linear.1} parent=1 // pred_check
      %p112 = pneg %p34
    $region27: #{quant_linear.1} parent=1 // pred_check_branch
      %114 = sbr.rel (%p112) target = $region29
    $region28: #{quant_linear.1} parent=1 // pred_region
      %v115 = vld [vmem:[#allocation2] sm:$0xff]
      %v116 = vld [vmem:[#allocation2 + $0x8] sm:$0xff]
      %v117 = vld [vmem:[%s2] sm:$0x1]
      %v119 = vperm.slane %v117, 0
      %v121 = vmul.f32 %v115, %v119
      %v122 = vmul.f32 %v116, %v119
      %v123 = vld [vmem:[%s3] sm:$0x1]
      %v125 = vperm.slane %v123, 0
      %v127 = vadd.f32 %v121, %v125
      %v128 = vadd.f32 %v122, %v125
      %v129 = vpack.c.bf16 %v127, %v127
      %v130 = vpack.c.bf16 %v128, %v128
      %131 = vst [vmem:[#allocation6] sm:$0xf] %v129
      %132 = vst [vmem:[#allocation6 + $0x4] sm:$0xf] %v130
    $region29: #{quant_linear.1} parent=1 // pred_fallthru
      _
    // Predicated region
    $region30: #{quant_linear.1} parent=1 // pred_check
      _
    $region31: #{quant_linear.1} parent=1 // pred_check_branch
      %134 = sbr.rel (0) target = $region33
    $region32: #{quant_linear.1} parent=1 // pred_region
      %136 = vsyncadd [#allocation5], 0
      %s137 = sshll.u32 [#allocation6], 4
      %s138 = int_to_ptr.vmem [resolvable:$true] %s137
      %s139 = sshll.u32 %s4, 4
      %s140 = int_to_ptr.hbm [resolvable:$true] %s139
      %145 = dma.vmem_to_hbm [thread:$0]  %s138, 128, %s140, [#allocation5], 64, 64, 4
    $region33: #{quant_linear.1} parent=1 // pred_fallthru
      _
    // Predicated region
    $region34: #{quant_linear.1} parent=1 // pred_check
      _
    $region35: #{quant_linear.1} parent=1 // pred_check_branch
      %147 = sbr.rel (0) target = $region37
    $region36: #{quant_linear.1} parent=1 // pred_region
      %149 = dma.done [#allocation5], 128
    $region37: #{quant_linear.1} parent=1 // pred_fallthru
      _
    %150 = vsyncpa [#allocation4], 1
    %151 = vsyncpa [#allocation5], 1

</llo_original>
